<compile_context>
chip_gen: v6e
topology: v6e:2x2x1
jax: 0.10.0
libtpu: 0.0.40
codegen_flags: <defaults>
</compile_context>

<pallas_src>
import math

import jax
import jax.numpy as jnp
from jax import lax
from jax.experimental import pallas as pl
from jax.experimental.pallas import tpu as pltpu


_VMEM_LIMIT = 48 * 1024 * 1024      # > 32 MiB default scoped, < v7x 64 MiB physical
_VMEM_BUDGET = 36 * 1024 * 1024     # working-set target when choosing tiles


# ----------------------------------------------------------------------------
# Helpers
# ----------------------------------------------------------------------------
def _pick_tile(dim, candidates):
    """Largest candidate that evenly divides `dim`, else the full dim."""
    for c in candidates:
        if c <= dim and dim % c == 0:
            return c
    return dim


def _seq_pad(s):
    """Pad a sequence length so tiles stay (8, 128)-friendly."""
    if s >= 128:
        return ((s + 127) // 128) * 128
    return ((s + 7) // 8) * 8


def _pad_rows(x, target):
    """Zero-pad the sequence (dim 1) of a (B, S, D) tensor to `target` rows."""
    if x.shape[1] == target:
        return x
    return jnp.pad(x, ((0, 0), (0, target - x.shape[1]), (0, 0)))


# ----------------------------------------------------------------------------
# Kernel 1: fused QKV projection
#   x (M, D) @ W_t (D, D) + b_t  for t in {q,k,v}  ->  three (H, M, d_k)
#   x is streamed once; weight/accumulator panels are full-width (N = D).
# ----------------------------------------------------------------------------
def _make_qkv_kernel(n_stack, num_heads, d_k):
    def kernel(x_ref, w_ref, b_ref, *rest):
        out_refs = rest[:n_stack]
        acc_ref = rest[n_stack]
        kk = pl.program_id(1)

        @pl.when(kk == 0)
        def _init():
            acc_ref[...] = jnp.zeros(acc_ref.shape, acc_ref.dtype)

        x = x_ref[...]
        for t in range(n_stack):
            acc_ref[t] = acc_ref[t] + jnp.dot(
                x, w_ref[t], preferred_element_type=jnp.float32
            )

        @pl.when(kk == pl.num_programs(1) - 1)
        def _finalize():
            for t in range(n_stack):
                # bias stays f32 and is added to the f32 accumulator on purpose
                res = (acc_ref[t] + b_ref[t]).astype(out_refs[t].dtype)
                for h in range(num_heads):
                    out_refs[t][h] = res[:, h * d_k:(h + 1) * d_k]

    return kernel


def _qkv_projection(x2d, w_stack, b_stack, num_heads, out_dtype):
    """x2d: (M, D); w_stack: (n, D, D) (in, out); b_stack: (n, 1, D) f32.

    Returns a tuple of n head-major arrays, each (H, M, d_k)."""
    M, D = x2d.shape
    n = w_stack.shape[0]
    d_k = D // num_heads
    ebytes = jnp.dtype(out_dtype).itemsize

    tm_c, tk_c = (256, 128), (512, 256, 128)
    if D >= 4096:
        tm_c, tk_c = (128,), (128,)
    elif D >= 2048:
        tk_c = (256, 128)
    tm = _pick_tile(M, tm_c)
    tk = _pick_tile(D, tk_c)

    grid = (M // tm, D // tk)
    out_shape = tuple(
        jax.ShapeDtypeStruct((num_heads, M, d_k), out_dtype) for _ in range(n)
    )
    out_specs = tuple(
        pl.BlockSpec((num_heads, tm, d_k), lambda i, kk: (0, i, 0))
        for _ in range(n)
    )
    cost = pl.CostEstimate(
        flops=2 * n * M * D * D,
        transcendentals=0,
        bytes_accessed=(M * D + n * D * D + n * M * D) * ebytes,
    )
    return pl.pallas_call(
        _make_qkv_kernel(n, num_heads, d_k),
        out_shape=out_shape,
        grid=grid,
        in_specs=[
            pl.BlockSpec((tm, tk), lambda i, kk: (i, kk)),
            pl.BlockSpec((n, tk, D), lambda i, kk: (0, kk, 0)),
            pl.BlockSpec((n, 1, D), lambda i, kk: (0, 0, 0)),
        ],
        out_specs=out_specs,
        scratch_shapes=[pltpu.VMEM((n, tm, D), jnp.float32)],
        compiler_params=pltpu.CompilerParams(
            dimension_semantics=("parallel", "arbitrary"),
            vmem_limit_bytes=_VMEM_LIMIT,
        ),
        cost_estimate=cost,
    )(x2d, w_stack, b_stack)


# ----------------------------------------------------------------------------
# Kernel 2: flash attention (online softmax), combined-heads output (B, S, D)
# ----------------------------------------------------------------------------
def _make_attn_kernel(scale, has_mask, is_causal, kv_len, kv_pad, d_k):
    tail_mask = kv_len < kv_pad

    def kernel(*refs):
        if has_mask:
            q_ref, k_ref, v_ref, mask_ref, o_ref, m_sc, l_sc, acc_sc = refs
        else:
            q_ref, k_ref, v_ref, o_ref, m_sc, l_sc, acc_sc = refs
            mask_ref = None
        qi = pl.program_id(1)
        ki = pl.program_id(2)

        @pl.when(ki == 0)
        def _init():
            m_sc[...] = jnp.full(m_sc.shape, -jnp.inf, m_sc.dtype)
            l_sc[...] = jnp.zeros(l_sc.shape, l_sc.dtype)
            acc_sc[...] = jnp.zeros(acc_sc.shape, acc_sc.dtype)

        H, _, tq, _ = q_ref.shape
        tkv = k_ref.shape[2]

        def _update():
            # Scale on q (d_k wide) rather than on the (tkv wide) scores.
            q = q_ref[...].reshape(H, tq, d_k) * scale
            k = k_ref[...].reshape(H, tkv, d_k)
            v = v_ref[...].reshape(H, tkv, d_k)

            # QK^T for all heads at once (contract d_k, batch over H).
            s = lax.dot_general(
                q, k,
                dimension_numbers=(((2,), (2,)), ((0,), (0,))),
                preferred_element_type=jnp.float32,
            )                                                   # (H, tq, tkv)

            if has_mask:
                s = jnp.where(mask_ref[0] == 0, jnp.float32(-1e9), s)
            if is_causal or tail_mask:
                col = ki * tkv + lax.broadcasted_iota(jnp.int32, (tq, tkv), 1)
                if is_causal:
                    row = qi * tq + lax.broadcasted_iota(jnp.int32, (tq, tkv), 0)
                    keep = col <= row
                    if tail_mask:
                        keep = jnp.logical_and(keep, col < kv_len)
                else:
                    keep = col < kv_len
                s = jnp.where(keep, s, jnp.float32(-1e9))

            # Online softmax update (all math in f32).
            m_prev = m_sc[...]                                  # (H, tq, 1)
            m_new = jnp.maximum(m_prev, jnp.max(s, axis=-1, keepdims=True))
            alpha = jnp.exp(m_prev - m_new)
            p = jnp.exp(s - m_new)
            l_sc[...] = alpha * l_sc[...] + jnp.sum(p, axis=-1, keepdims=True)
            pv = lax.dot_general(
                p.astype(v.dtype), v,
                dimension_numbers=(((2,), (1,)), ((0,), (0,))),
                preferred_element_type=jnp.float32,
            )                                                   # (H, tq, d_k)
            acc_sc[...] = alpha * acc_sc[...] + pv
            m_sc[...] = m_new

        if is_causal:
            # Skip fully-masked kv tiles (their k/v index_map is clamped, so no
            # fresh DMA is issued either).
            @pl.when(ki * tkv <= qi * tq + tq - 1)
            def _():
                _update()
        else:
            _update()

        @pl.when(ki == pl.num_programs(2) - 1)
        def _finalize():
            inv_l = pl.reciprocal(l_sc[...], approx=True)       # EUP slot
            res = acc_sc[...] * inv_l                           # (H, tq, d_k) f32
            # Write combined-heads layout so W_o is a plain full-depth matmul.
            for h in range(H):
                o_ref[0, :, h * d_k:(h + 1) * d_k] = res[h].astype(o_ref.dtype)

    return kernel


def _flash_attention(q_h, k_h, v_h, mask_i8, d_k, kv_len, is_causal, out_dtype):
    """q_h/k_h/v_h: (H, B, S, d_k); mask_i8: None or (B, 1|H, Sq, Skv) int8."""
    H, B, Sq, _ = q_h.shape
    Skv = k_h.shape[2]
    D = H * d_k
    scale = 1.0 / math.sqrt(d_k)
    ebytes = jnp.dtype(out_dtype).itemsize

    # Prefer big kv tiles (MXU output width) and big q tiles (fewer K/V
    # re-streams); fall back when the working set would exceed the budget.
    def fits(tq_, tkv_):
        blocks = 2 * ebytes * (H * tq_ * d_k + 2 * H * tkv_ * d_k)
        blocks += 2 * ebytes * tq_ * D
        if mask_i8 is not None:
            blocks += 2 * mask_i8.shape[1] * tq_ * tkv_
        scratch = H * tq_ * (2 * 128 + d_k) * 4     # m/l (lane-padded) + acc
        temps = 3 * H * tq_ * tkv_ * 4              # s / p f32 temporaries
        return blocks + scratch + temps <= _VMEM_BUDGET

    tq, tkv = Sq, Skv
    for cq, ckv in ((512, 256), (256, 256), (256, 128), (128, 256), (128, 128)):
        if Sq % cq == 0 and Skv % ckv == 0 and fits(cq, ckv):
            tq, tkv = cq, ckv
            break

    grid = (B, Sq // tq, Skv // tkv)

    if is_causal:
        def kv_idx(b, qi, ki):
            return (0, b, jnp.minimum(ki, (qi * tq + tq - 1) // tkv), 0)
    else:
        def kv_idx(b, qi, ki):
            return (0, b, ki, 0)

    in_specs = [
        pl.BlockSpec((H, 1, tq, d_k), lambda b, qi, ki: (0, b, qi, 0)),
        pl.BlockSpec((H, 1, tkv, d_k), kv_idx),
        pl.BlockSpec((H, 1, tkv, d_k), kv_idx),
    ]
    args = [q_h, k_h, v_h]
    if mask_i8 is not None:
        Hm = mask_i8.shape[1]
        in_specs.append(
            pl.BlockSpec((1, Hm, tq, tkv), lambda b, qi, ki: (b, 0, qi, ki))
        )
        args.append(mask_i8)

    cost = pl.CostEstimate(
        flops=4 * B * H * Sq * Skv * d_k,
        transcendentals=B * H * Sq * Skv,
        bytes_accessed=ebytes * (B * H * (Sq + 2 * Skv) * d_k + B * Sq * D)
        + (0 if mask_i8 is None else int(mask_i8.size)),
    )

    return pl.pallas_call(
        _make_attn_kernel(scale, mask_i8 is not None, is_causal, kv_len, Skv, d_k),
        out_shape=jax.ShapeDtypeStruct((B, Sq, D), out_dtype),
        grid=grid,
        in_specs=in_specs,
        out_specs=pl.BlockSpec((1, tq, D), lambda b, qi, ki: (b, qi, 0)),
        scratch_shapes=[
            pltpu.VMEM((H, tq, 1), jnp.float32),    # running max
            pltpu.VMEM((H, tq, 1), jnp.float32),    # running sum
            pltpu.VMEM((H, tq, d_k), jnp.float32),  # output accumulator
        ],
        compiler_params=pltpu.CompilerParams(
            dimension_semantics=("parallel", "parallel", "arbitrary"),
            vmem_limit_bytes=_VMEM_LIMIT,
        ),
        cost_estimate=cost,
    )(*args)


# ----------------------------------------------------------------------------
# Kernel 3: output projection   out(M, D) = attn(M, D) @ W_o(D, D) + b_o
#   Plain tiled matmul with full-depth K (no per-head skinny-K reduction).
# ----------------------------------------------------------------------------
def _out_proj_kernel(x_ref, w_ref, b_ref, o_ref, acc_ref):
    kk = pl.program_id(2)

    @pl.when(kk == 0)
    def _init():
        acc_ref[...] = jnp.zeros(acc_ref.shape, acc_ref.dtype)

    acc_ref[...] += jnp.dot(
        x_ref[...], w_ref[...], preferred_element_type=jnp.float32
    )

    @pl.when(kk == pl.num_programs(2) - 1)
    def _finalize():
        o_ref[...] = (acc_ref[...] + b_ref[...]).astype(o_ref.dtype)


def _out_projection(x2d, w, b, out_dtype):
    M, D = x2d.shape
    N = w.shape[1]
    ebytes = jnp.dtype(out_dtype).itemsize
    tm = _pick_tile(M, (256, 128))
    tn = _pick_tile(N, (512, 256, 128))
    tk = _pick_tile(D, (512, 256, 128))
    grid = (M // tm, N // tn, D // tk)
    cost = pl.CostEstimate(
        flops=2 * M * D * N,
        transcendentals=0,
        bytes_accessed=ebytes * (M * D + D * N + M * N),
    )
    return pl.pallas_call(
        _out_proj_kernel,
        out_shape=jax.ShapeDtypeStruct((M, N), out_dtype),
        grid=grid,
        in_specs=[
            pl.BlockSpec((tm, tk), lambda i, j, kk: (i, kk)),
            pl.BlockSpec((tk, tn), lambda i, j, kk: (kk, j)),
            pl.BlockSpec((1, tn), lambda i, j, kk: (0, j)),
        ],
        out_specs=pl.BlockSpec((tm, tn), lambda i, j, kk: (i, j)),
        scratch_shapes=[pltpu.VMEM((tm, tn), jnp.float32)],
        compiler_params=pltpu.CompilerParams(
            dimension_semantics=("parallel", "parallel", "arbitrary"),
            vmem_limit_bytes=_VMEM_LIMIT,
        ),
        cost_estimate=cost,
    )(x2d, w, b)


# ----------------------------------------------------------------------------
# Parameters (match nn.Linear defaults) + kernel-layout preparation
# ----------------------------------------------------------------------------
def init_mha_params(key, d_model):
    """w stored as (in, out) == W_pytorch.T so y = x @ w + b."""
    bound = 1.0 / math.sqrt(d_model)
    keys = jax.random.split(key, 8)
    params = {}
    for i, name in enumerate(["q", "k", "v", "o"]):
        w = jax.random.uniform(keys[2 * i], (d_model, d_model), jnp.float32,
                               -bound, bound)
        b = jax.random.uniform(keys[2 * i + 1], (d_model,), jnp.float32,
                               -bound, bound)
        params[name] = (w, b)
    return params


def prepare_kernel_params(params):
    """One-time re-layout of the weights for the fused kernels."""
    wq, bq = params["q"]
    wk, bk = params["k"]
    wv, bv = params["v"]
    wo, bo = params["o"]
    D = wq.shape[0]
    return {
        "w_qkv": jnp.stack([wq, wk, wv], axis=0),                # (3, D, D)
        "b_qkv": jnp.stack([bq, bk, bv], axis=0).reshape(3, 1, D),
        "w_o": wo,                                               # (D, D)
        "b_o": bo.reshape(1, D),
    }


# ----------------------------------------------------------------------------
# MultiHeadAttention forward
# ----------------------------------------------------------------------------
def multi_head_attention(kparams, Q, K, V, num_heads, mask=None,
                         is_causal=False, compute_dtype=jnp.float32):
    B, Sq, D = Q.shape
    Skv = K.shape[1]
    d_k = D // num_heads
    cd = compute_dtype

    Sq_p = _seq_pad(Sq)
    Skv_p = _seq_pad(Skv)
    same_qkv = (Q is K) and (K is V)
    if same_qkv:
        Sq_p = Skv_p = max(Sq_p, Skv_p)

    Qp = _pad_rows(Q, Sq_p).reshape(B * Sq_p, D).astype(cd)
    if same_qkv:
        Kp = Vp = Qp
    else:
        Kp = _pad_rows(K, Skv_p).reshape(B * Skv_p, D).astype(cd)
        Vp = _pad_rows(V, Skv_p).reshape(B * Skv_p, D).astype(cd)

    w_qkv = kparams["w_qkv"].astype(cd)
    b_qkv = kparams["b_qkv"]            # bias kept f32 (added to f32 accumulator)

    if same_qkv:
        # Fused path: x is DMA'd once and projected to q, k, v in one kernel.
        q_h, k_h, v_h = _qkv_projection(Qp, w_qkv, b_qkv, num_heads, cd)
    else:
        q_h = _qkv_projection(Qp, w_qkv[0:1], b_qkv[0:1], num_heads, cd)[0]
        k_h = _qkv_projection(Kp, w_qkv[1:2], b_qkv[1:2], num_heads, cd)[0]
        v_h = _qkv_projection(Vp, w_qkv[2:3], b_qkv[2:3], num_heads, cd)[0]

    q_h = q_h.reshape(num_heads, B, Sq_p, d_k)     # free reshapes (leading dims)
    k_h = k_h.reshape(num_heads, B, Skv_p, d_k)
    v_h = v_h.reshape(num_heads, B, Skv_p, d_k)

    mask_i8 = None
    if mask is not None:
        m = jnp.asarray(mask)
        while m.ndim < 4:
            m = m[None]
        # Keep the natural (B, 1|H, S, S) shape: no broadcast over heads.
        tgt = jnp.broadcast_shapes(tuple(m.shape), (B, 1, Sq, Skv))
        m = jnp.broadcast_to(m != 0, tgt).astype(jnp.int8)
        mask_i8 = jnp.pad(
            m, ((0, 0), (0, 0), (0, Sq_p - Sq), (0, Skv_p - Skv))
        )

    attn = _flash_attention(q_h, k_h, v_h, mask_i8, d_k, Skv, is_causal, cd)
    # attn: (B, Sq_p, D) combined-heads layout -> plain full-depth W_o matmul.
    out = _out_projection(
        attn.reshape(B * Sq_p, D), kparams["w_o"].astype(cd), kparams["b_o"], cd
    )
    return out.reshape(B, Sq_p, D)[:, :Sq]


# ----------------------------------------------------------------------------
# Pure-JAX reference (mirrors the PyTorch module)
# ----------------------------------------------------------------------------
def mha_reference(params, Q, K, V, num_heads, mask=None):
    B, Sq, d_model = Q.shape
    d_k = d_model // num_heads

    def lin(x, w, b):
        return x @ w + b

    def split(x):
        b_, s_, _ = x.shape
        return x.reshape(b_, s_, num_heads, d_k).transpose(0, 2, 1, 3)

    q = split(lin(Q, *params["q"]))
    k = split(lin(K, *params["k"]))
    v = split(lin(V, *params["v"]))
    scores = jnp.einsum("bhqd,bhkd->bhqk", q, k) / math.sqrt(d_k)
    if mask is not None:
        scores = jnp.where(mask == 0, -1e9, scores)
    probs = jax.nn.softmax(scores, axis=-1)
    out = jnp.einsum("bhqk,bhkd->bhqd", probs, v)
    out = out.transpose(0, 2, 1, 3).reshape(B, Sq, d_model)
    return lin(out, *params["o"])


if __name__ == "__main__":
    batch, seq, d_model, num_heads = 2, 8, 32, 4

    key = jax.random.PRNGKey(0)
    kp, kx, kq, kk_, kv_ = jax.random.split(key, 5)
    params = init_mha_params(kp, d_model)
    kparams = prepare_kernel_params(params)

    X = jax.random.normal(kx, (batch, seq, d_model), jnp.float32)
    Q = jax.random.normal(kq, (batch, seq, d_model), jnp.float32)
    K = jax.random.normal(kk_, (batch, seq, d_model), jnp.float32)
    V = jax.random.normal(kv_, (batch, seq, d_model), jnp.float32)

    # approx reciprocal + q-side scaling -> slightly looser than 2e-4 parity.
    tol = dict(atol=2e-3, rtol=2e-3)

    # 1) self-attention, no mask (fused QKV projection path: x read once)
    out = jax.block_until_ready(multi_head_attention(kparams, X, X, X, num_heads))
    ref = mha_reference(params, X, X, X, num_heads)
    assert out.shape == (batch, seq, d_model)
    assert jnp.allclose(out, ref, **tol), "self-attention (no mask) mismatch"

    # 2) distinct Q/K/V + explicit user mask of natural shape (1, 1, S, S)
    user_mask = (jax.random.uniform(jax.random.PRNGKey(1), (1, 1, seq, seq)) > 0.3)
    user_mask = user_mask.astype(jnp.int32)
    out_m = jax.block_until_ready(
        multi_head_attention(kparams, Q, K, V, num_heads, mask=user_mask))
    ref_m = mha_reference(params, Q, K, V, num_heads, mask=user_mask)
    assert jnp.allclose(out_m, ref_m, **tol), "user-mask mismatch"

    # 3) causal fast path (mask generated in-kernel, masked kv tiles skipped)
    causal = jnp.tril(jnp.ones((seq, seq), jnp.int32))[None, None]
    out_c = jax.block_until_ready(
        multi_head_attention(kparams, X, X, X, num_heads, is_causal=True))
    ref_c = mha_reference(params, X, X, X, num_heads, mask=causal)
    assert jnp.allclose(out_c, ref_c, **tol), "causal fast-path mismatch"

    # 4) ragged sequence length (padded to 16, kv tail masked in-kernel)
    Xr = jax.random.normal(jax.random.PRNGKey(2), (batch, 12, d_model), jnp.float32)
    out_r = jax.block_until_ready(multi_head_attention(kparams, Xr, Xr, Xr, num_heads))
    ref_r = mha_reference(params, Xr, Xr, Xr, num_heads)
    assert out_r.shape == (batch, 12, d_model)
    assert jnp.allclose(out_r, ref_r, **tol), "ragged-seq mismatch"

    # 5) bf16 activations/weights with f32 accumulation (MXU fast path)
    out_bf = jax.block_until_ready(
        multi_head_attention(kparams, X, X, X, num_heads,
                             compute_dtype=jnp.bfloat16))
    assert jnp.allclose(out_bf.astype(jnp.float32), ref, atol=1e-1, rtol=1e-1), \
        "bf16 mismatch"

    print("KERNEL_OK")
</pallas_src>

<mosaic_0001>
module attributes {stable_mosaic.version = 11 : i64} {
  func.func @kernel(%arg0: i32, %arg1: i32, %arg2: memref<16x32xf32, #tpu.memory_space<vmem>>, %arg3: memref<3x32x32xf32, #tpu.memory_space<vmem>>, %arg4: memref<3x1x32xf32, #tpu.memory_space<vmem>>, %arg5: memref<4x16x8xf32, #tpu.memory_space<vmem>>, %arg6: memref<4x16x8xf32, #tpu.memory_space<vmem>>, %arg7: memref<4x16x8xf32, #tpu.memory_space<vmem>>, %arg8: memref<3x16x32xf32, #tpu.memory_space<vmem>>) attributes {dimension_semantics = [#tpu.dimension_semantics<parallel>, #tpu.dimension_semantics<arbitrary>], iteration_bounds = array<i64: 1, 1>, scalar_prefetch = 0 : i64, scratch_operands = 1 : i64, tpu.core_type = #tpu.core_type<tc>, window_params = [{transform_indices = @transform_0, window_bounds = array<i64: 16, 32>}, {transform_indices = @transform_1, window_bounds = array<i64: 3, 32, 32>}, {pipeline_mode = #tpu.pipeline_mode<synchronous>, transform_indices = @transform_2, window_bounds = array<i64: 3, 1, 32>}, {transform_indices = @transform_3, window_bounds = array<i64: 4, 16, 8>}, {transform_indices = @transform_4, window_bounds = array<i64: 4, 16, 8>}, {transform_indices = @transform_5, window_bounds = array<i64: 4, 16, 8>}]} {
    %c0_i32 = arith.constant 0 : i32
    %0 = arith.cmpi eq, %arg1, %c0_i32 : i32
    %1 = arith.extui %0 : i1 to i32
    %c0_i32_0 = arith.constant 0 : i32
    %2 = arith.cmpi ne, %1, %c0_i32_0 : i32
    scf.if %2 {
      %cst_31 = arith.constant 0.000000e+00 : f32
      %34 = vector.broadcast %cst_31 : f32 to vector<3x16x32xf32>
      %c0_32 = arith.constant 0 : index
      %c0_33 = arith.constant 0 : index
      %c0_34 = arith.constant 0 : index
      %35 = vector.load %arg8[%c0_32, %c0_33, %c0_34] : memref<3x16x32xf32, #tpu.memory_space<vmem>>, vector<3x16x32xf32>
      tpu.vector_store %arg8[%c0_32, %c0_33, %c0_34], %34 {strides = array<i32>} : memref<3x16x32xf32, #tpu.memory_space<vmem>>, vector<3x16x32xf32>,
    } else {
    }
    %c0 = arith.constant 0 : index
    %c0_1 = arith.constant 0 : index
    %3 = vector.load %arg2[%c0, %c0_1] : memref<16x32xf32, #tpu.memory_space<vmem>>, vector<16x32xf32>
    %c0_2 = arith.constant 0 : index
    %c0_3 = arith.constant 0 : index
    %c0_4 = arith.constant 0 : index
    %4 = vector.load %arg8[%c0_2, %c0_3, %c0_4] : memref<3x16x32xf32, #tpu.memory_space<vmem>>, vector<1x16x32xf32>
    %5 = vector.shape_cast %4 : vector<1x16x32xf32> to vector<16x32xf32>
    %c0_5 = arith.constant 0 : index
    %c0_6 = arith.constant 0 : index
    %c0_7 = arith.constant 0 : index
    %6 = vector.load %arg3[%c0_5, %c0_6, %c0_7] : memref<3x32x32xf32, #tpu.memory_space<vmem>>, vector<1x32x32xf32>
    %7 = vector.shape_cast %6 : vector<1x32x32xf32> to vector<32x32xf32>
    %cst = arith.constant dense<0.000000e+00> : vector<16x32xf32>
    %8 = tpu.matmul %3, %7, %cst {dimension_numbers = #tpu.dot_dimension_numbers<[1], [0], [0], [1], [0, 0, 1, 1], [], []>} : vector<16x32xf32>, vector<32x32xf32>, vector<16x32xf32> -> vector<16x32xf32>
    %9 = arith.addf %5, %8 : vector<16x32xf32>
    %c0_8 = arith.constant 0 : index
    %c0_9 = arith.constant 0 : index
    %c0_10 = arith.constant 0 : index
    %10 = vector.load %arg8[%c0_8, %c0_9, %c0_10] : memref<3x16x32xf32, #tpu.memory_space<vmem>>, vector<1x16x32xf32>
    %11 = vector.shape_cast %10 : vector<1x16x32xf32> to vector<16x32xf32>
    %12 = vector.shape_cast %9 : vector<16x32xf32> to vector<1x16x32xf32>
    tpu.vector_store %arg8[%c0_8, %c0_9, %c0_10], %12 {strides = array<i32>} : memref<3x16x32xf32, #tpu.memory_space<vmem>>, vector<1x16x32xf32>,
    %c1 = arith.constant 1 : index
    %c0_11 = arith.constant 0 : index
    %c0_12 = arith.constant 0 : index
    %13 = vector.load %arg8[%c1, %c0_11, %c0_12] : memref<3x16x32xf32, #tpu.memory_space<vmem>>, vector<1x16x32xf32>
    %14 = vector.shape_cast %13 : vector<1x16x32xf32> to vector<16x32xf32>
    %c1_13 = arith.constant 1 : index
    %c0_14 = arith.constant 0 : index
    %c0_15 = arith.constant 0 : index
    %15 = vector.load %arg3[%c1_13, %c0_14, %c0_15] : memref<3x32x32xf32, #tpu.memory_space<vmem>>, vector<1x32x32xf32>
    %16 = vector.shape_cast %15 : vector<1x32x32xf32> to vector<32x32xf32>
    %cst_16 = arith.constant dense<0.000000e+00> : vector<16x32xf32>
    %17 = tpu.matmul %3, %16, %cst_16 {dimension_numbers = #tpu.dot_dimension_numbers<[1], [0], [0], [1], [0, 0, 1, 1], [], []>} : vector<16x32xf32>, vector<32x32xf32>, vector<16x32xf32> -> vector<16x32xf32>
    %18 = arith.addf %14, %17 : vector<16x32xf32>
    %c1_17 = arith.constant 1 : index
    %c0_18 = arith.constant 0 : index
    %c0_19 = arith.constant 0 : index
    %19 = vector.load %arg8[%c1_17, %c0_18, %c0_19] : memref<3x16x32xf32, #tpu.memory_space<vmem>>, vector<1x16x32xf32>
    %20 = vector.shape_cast %19 : vector<1x16x32xf32> to vector<16x32xf32>
    %21 = vector.shape_cast %18 : vector<16x32xf32> to vector<1x16x32xf32>
    tpu.vector_store %arg8[%c1_17, %c0_18, %c0_19], %21 {strides = array<i32>} : memref<3x16x32xf32, #tpu.memory_space<vmem>>, vector<1x16x32xf32>,
    %c2 = arith.constant 2 : index
    %c0_20 = arith.constant 0 : index
    %c0_21 = arith.constant 0 : index
    %22 = vector.load %arg8[%c2, %c0_20, %c0_21] : memref<3x16x32xf32, #tpu.memory_space<vmem>>, vector<1x16x32xf32>
    %23 = vector.shape_cast %22 : vector<1x16x32xf32> to vector<16x32xf32>
    %c2_22 = arith.constant 2 : index
    %c0_23 = arith.constant 0 : index
    %c0_24 = arith.constant 0 : index
    %24 = vector.load %arg3[%c2_22, %c0_23, %c0_24] : memref<3x32x32xf32, #tpu.memory_space<vmem>>, vector<1x32x32xf32>
    %25 = vector.shape_cast %24 : vector<1x32x32xf32> to vector<32x32xf32>
    %cst_25 = arith.constant dense<0.000000e+00> : vector<16x32xf32>
    %26 = tpu.matmul %3, %25, %cst_25 {dimension_numbers = #tpu.dot_dimension_numbers<[1], [0], [0], [1], [0, 0, 1, 1], [], []>} : vector<16x32xf32>, vector<32x32xf32>, vector<16x32xf32> -> vector<16x32xf32>
    %27 = arith.addf %23, %26 : vector<16x32xf32>
    %c2_26 = arith.constant 2 : index
    %c0_27 = arith.constant 0 : index
    %c0_28 = arith.constant 0 : index
    %28 = vector.load %arg8[%c2_26, %c0_27, %c0_28] : memref<3x16x32xf32, #tpu.memory_space<vmem>>, vector<1x16x32xf32>
    %29 = vector.shape_cast %28 : vector<1x16x32xf32> to vector<16x32xf32>
    %30 = vector.shape_cast %27 : vector<16x32xf32> to vector<1x16x32xf32>
    tpu.vector_store %arg8[%c2_26, %c0_27, %c0_28], %30 {strides = array<i32>} : memref<3x16x32xf32, #tpu.memory_space<vmem>>, vector<1x16x32xf32>,
    %c0_i32_29 = arith.constant 0 : i32
    %31 = arith.cmpi eq, %arg1, %c0_i32_29 : i32
    %32 = arith.extui %31 : i1 to i32
    %c0_i32_30 = arith.constant 0 : i32
    %33 = arith.cmpi ne, %32, %c0_i32_30 : i32
    scf.if %33 {
      %c0_31 = arith.constant 0 : index
      %c0_32 = arith.constant 0 : index
      %c0_33 = arith.constant 0 : index
      %34 = vector.load %arg8[%c0_31, %c0_32, %c0_33] : memref<3x16x32xf32, #tpu.memory_space<vmem>>, vector<1x16x32xf32>
      %35 = vector.shape_cast %34 : vector<1x16x32xf32> to vector<16x32xf32>
      %c0_34 = arith.constant 0 : index
      %c0_35 = arith.constant 0 : index
      %c0_36 = arith.constant 0 : index
      %36 = vector.load %arg4[%c0_34, %c0_35, %c0_36] : memref<3x1x32xf32, #tpu.memory_space<vmem>>, vector<1x1x32xf32>
      %37 = vector.shape_cast %36 : vector<1x1x32xf32> to vector<1x32xf32>
      %38 = vector.broadcast %37 : vector<1x32xf32> to vector<16x32xf32>
      %39 = arith.addf %35, %38 : vector<16x32xf32>
      %40 = vector.extract_strided_slice %39 {offsets = [0, 0], sizes = [16, 8], strides = [1, 1]} : vector<16x32xf32> to vector<16x8xf32>
      %c0_37 = arith.constant 0 : index
      %c0_38 = arith.constant 0 : index
      %c0_39 = arith.constant 0 : index
      %41 = vector.load %arg5[%c0_37, %c0_38, %c0_39] : memref<4x16x8xf32, #tpu.memory_space<vmem>>, vector<1x16x8xf32>
      %42 = vector.shape_cast %41 : vector<1x16x8xf32> to vector<16x8xf32>
      %43 = vector.shape_cast %40 : vector<16x8xf32> to vector<1x16x8xf32>
      tpu.vector_store %arg5[%c0_37, %c0_38, %c0_39], %43 {strides = array<i32>} : memref<4x16x8xf32, #tpu.memory_space<vmem>>, vector<1x16x8xf32>,
      %44 = vector.extract_strided_slice %39 {offsets = [0, 8], sizes = [16, 8], strides = [1, 1]} : vector<16x32xf32> to vector<16x8xf32>
      %c1_40 = arith.constant 1 : index
      %c0_41 = arith.constant 0 : index
      %c0_42 = arith.constant 0 : index
      %45 = vector.load %arg5[%c1_40, %c0_41, %c0_42] : memref<4x16x8xf32, #tpu.memory_space<vmem>>, vector<1x16x8xf32>
      %46 = vector.shape_cast %45 : vector<1x16x8xf32> to vector<16x8xf32>
      %47 = vector.shape_cast %44 : vector<16x8xf32> to vector<1x16x8xf32>
      tpu.vector_store %arg5[%c1_40, %c0_41, %c0_42], %47 {strides = array<i32>} : memref<4x16x8xf32, #tpu.memory_space<vmem>>, vector<1x16x8xf32>,
      %48 = vector.extract_strided_slice %39 {offsets = [0, 16], sizes = [16, 8], strides = [1, 1]} : vector<16x32xf32> to vector<16x8xf32>
      %c2_43 = arith.constant 2 : index
      %c0_44 = arith.constant 0 : index
      %c0_45 = arith.constant 0 : index
      %49 = vector.load %arg5[%c2_43, %c0_44, %c0_45] : memref<4x16x8xf32, #tpu.memory_space<vmem>>, vector<1x16x8xf32>
      %50 = vector.shape_cast %49 : vector<1x16x8xf32> to vector<16x8xf32>
      %51 = vector.shape_cast %48 : vector<16x8xf32> to vector<1x16x8xf32>
      tpu.vector_store %arg5[%c2_43, %c0_44, %c0_45], %51 {strides = array<i32>} : memref<4x16x8xf32, #tpu.memory_space<vmem>>, vector<1x16x8xf32>,
      %52 = vector.extract_strided_slice %39 {offsets = [0, 24], sizes = [16, 8], strides = [1, 1]} : vector<16x32xf32> to vector<16x8xf32>
      %c3 = arith.constant 3 : index
      %c0_46 = arith.constant 0 : index
      %c0_47 = arith.constant 0 : index
      %53 = vector.load %arg5[%c3, %c0_46, %c0_47] : memref<4x16x8xf32, #tpu.memory_space<vmem>>, vector<1x16x8xf32>
      %54 = vector.shape_cast %53 : vector<1x16x8xf32> to vector<16x8xf32>
      %55 = vector.shape_cast %52 : vector<16x8xf32> to vector<1x16x8xf32>
      tpu.vector_store %arg5[%c3, %c0_46, %c0_47], %55 {strides = array<i32>} : memref<4x16x8xf32, #tpu.memory_space<vmem>>, vector<1x16x8xf32>,
      %c1_48 = arith.constant 1 : index
      %c0_49 = arith.constant 0 : index
      %c0_50 = arith.constant 0 : index
      %56 = vector.load %arg8[%c1_48, %c0_49, %c0_50] : memref<3x16x32xf32, #tpu.memory_space<vmem>>, vector<1x16x32xf32>
      %57 = vector.shape_cast %56 : vector<1x16x32xf32> to vector<16x32xf32>
      %c1_51 = arith.constant 1 : index
      %c0_52 = arith.constant 0 : index
      %c0_53 = arith.constant 0 : index
      %58 = vector.load %arg4[%c1_51, %c0_52, %c0_53] : memref<3x1x32xf32, #tpu.memory_space<vmem>>, vector<1x1x32xf32>
      %59 = vector.shape_cast %58 : vector<1x1x32xf32> to vector<1x32xf32>
      %60 = vector.broadcast %59 : vector<1x32xf32> to vector<16x32xf32>
      %61 = arith.addf %57, %60 : vector<16x32xf32>
      %62 = vector.extract_strided_slice %61 {offsets = [0, 0], sizes = [16, 8], strides = [1, 1]} : vector<16x32xf32> to vector<16x8xf32>
      %c0_54 = arith.constant 0 : index
      %c0_55 = arith.constant 0 : index
      %c0_56 = arith.constant 0 : index
      %63 = vector.load %arg6[%c0_54, %c0_55, %c0_56] : memref<4x16x8xf32, #tpu.memory_space<vmem>>, vector<1x16x8xf32>
      %64 = vector.shape_cast %63 : vector<1x16x8xf32> to vector<16x8xf32>
      %65 = vector.shape_cast %62 : vector<16x8xf32> to vector<1x16x8xf32>
      tpu.vector_store %arg6[%c0_54, %c0_55, %c0_56], %65 {strides = array<i32>} : memref<4x16x8xf32, #tpu.memory_space<vmem>>, vector<1x16x8xf32>,
      %66 = vector.extract_strided_slice %61 {offsets = [0, 8], sizes = [16, 8], strides = [1, 1]} : vector<16x32xf32> to vector<16x8xf32>
      %c1_57 = arith.constant 1 : index
      %c0_58 = arith.constant 0 : index
      %c0_59 = arith.constant 0 : index
      %67 = vector.load %arg6[%c1_57, %c0_58, %c0_59] : memref<4x16x8xf32, #tpu.memory_space<vmem>>, vector<1x16x8xf32>
      %68 = vector.shape_cast %67 : vector<1x16x8xf32> to vector<16x8xf32>
      %69 = vector.shape_cast %66 : vector<16x8xf32> to vector<1x16x8xf32>
      tpu.vector_store %arg6[%c1_57, %c0_58, %c0_59], %69 {strides = array<i32>} : memref<4x16x8xf32, #tpu.memory_space<vmem>>, vector<1x16x8xf32>,
      %70 = vector.extract_strided_slice %61 {offsets = [0, 16], sizes = [16, 8], strides = [1, 1]} : vector<16x32xf32> to vector<16x8xf32>
      %c2_60 = arith.constant 2 : index
      %c0_61 = arith.constant 0 : index
      %c0_62 = arith.constant 0 : index
      %71 = vector.load %arg6[%c2_60, %c0_61, %c0_62] : memref<4x16x8xf32, #tpu.memory_space<vmem>>, vector<1x16x8xf32>
      %72 = vector.shape_cast %71 : vector<1x16x8xf32> to vector<16x8xf32>
      %73 = vector.shape_cast %70 : vector<16x8xf32> to vector<1x16x8xf32>
      tpu.vector_store %arg6[%c2_60, %c0_61, %c0_62], %73 {strides = array<i32>} : memref<4x16x8xf32, #tpu.memory_space<vmem>>, vector<1x16x8xf32>,
      %74 = vector.extract_strided_slice %61 {offsets = [0, 24], sizes = [16, 8], strides = [1, 1]} : vector<16x32xf32> to vector<16x8xf32>
      %c3_63 = arith.constant 3 : index
      %c0_64 = arith.constant 0 : index
      %c0_65 = arith.constant 0 : index
      %75 = vector.load %arg6[%c3_63, %c0_64, %c0_65] : memref<4x16x8xf32, #tpu.memory_space<vmem>>, vector<1x16x8xf32>
      %76 = vector.shape_cast %75 : vector<1x16x8xf32> to vector<16x8xf32>
      %77 = vector.shape_cast %74 : vector<16x8xf32> to vector<1x16x8xf32>
      tpu.vector_store %arg6[%c3_63, %c0_64, %c0_65], %77 {strides = array<i32>} : memref<4x16x8xf32, #tpu.memory_space<vmem>>, vector<1x16x8xf32>,
      %c2_66 = arith.constant 2 : index
      %c0_67 = arith.constant 0 : index
      %c0_68 = arith.constant 0 : index
      %78 = vector.load %arg8[%c2_66, %c0_67, %c0_68] : memref<3x16x32xf32, #tpu.memory_space<vmem>>, vector<1x16x32xf32>
      %79 = vector.shape_cast %78 : vector<1x16x32xf32> to vector<16x32xf32>
      %c2_69 = arith.constant 2 : index
      %c0_70 = arith.constant 0 : index
      %c0_71 = arith.constant 0 : index
      %80 = vector.load %arg4[%c2_69, %c0_70, %c0_71] : memref<3x1x32xf32, #tpu.memory_space<vmem>>, vector<1x1x32xf32>
      %81 = vector.shape_cast %80 : vector<1x1x32xf32> to vector<1x32xf32>
      %82 = vector.broadcast %81 : vector<1x32xf32> to vector<16x32xf32>
      %83 = arith.addf %79, %82 : vector<16x32xf32>
      %84 = vector.extract_strided_slice %83 {offsets = [0, 0], sizes = [16, 8], strides = [1, 1]} : vector<16x32xf32> to vector<16x8xf32>
      %c0_72 = arith.constant 0 : index
      %c0_73 = arith.constant 0 : index
      %c0_74 = arith.constant 0 : index
      %85 = vector.load %arg7[%c0_72, %c0_73, %c0_74] : memref<4x16x8xf32, #tpu.memory_space<vmem>>, vector<1x16x8xf32>
      %86 = vector.shape_cast %85 : vector<1x16x8xf32> to vector<16x8xf32>
      %87 = vector.shape_cast %84 : vector<16x8xf32> to vector<1x16x8xf32>
      tpu.vector_store %arg7[%c0_72, %c0_73, %c0_74], %87 {strides = array<i32>} : memref<4x16x8xf32, #tpu.memory_space<vmem>>, vector<1x16x8xf32>,
      %88 = vector.extract_strided_slice %83 {offsets = [0, 8], sizes = [16, 8], strides = [1, 1]} : vector<16x32xf32> to vector<16x8xf32>
      %c1_75 = arith.constant 1 : index
      %c0_76 = arith.constant 0 : index
      %c0_77 = arith.constant 0 : index
      %89 = vector.load %arg7[%c1_75, %c0_76, %c0_77] : memref<4x16x8xf32, #tpu.memory_space<vmem>>, vector<1x16x8xf32>
      %90 = vector.shape_cast %89 : vector<1x16x8xf32> to vector<16x8xf32>
      %91 = vector.shape_cast %88 : vector<16x8xf32> to vector<1x16x8xf32>
      tpu.vector_store %arg7[%c1_75, %c0_76, %c0_77], %91 {strides = array<i32>} : memref<4x16x8xf32, #tpu.memory_space<vmem>>, vector<1x16x8xf32>,
      %92 = vector.extract_strided_slice %83 {offsets = [0, 16], sizes = [16, 8], strides = [1, 1]} : vector<16x32xf32> to vector<16x8xf32>
      %c2_78 = arith.constant 2 : index
      %c0_79 = arith.constant 0 : index
      %c0_80 = arith.constant 0 : index
      %93 = vector.load %arg7[%c2_78, %c0_79, %c0_80] : memref<4x16x8xf32, #tpu.memory_space<vmem>>, vector<1x16x8xf32>
      %94 = vector.shape_cast %93 : vector<1x16x8xf32> to vector<16x8xf32>
      %95 = vector.shape_cast %92 : vector<16x8xf32> to vector<1x16x8xf32>
      tpu.vector_store %arg7[%c2_78, %c0_79, %c0_80], %95 {strides = array<i32>} : memref<4x16x8xf32, #tpu.memory_space<vmem>>, vector<1x16x8xf32>,
      %96 = vector.extract_strided_slice %83 {offsets = [0, 24], sizes = [16, 8], strides = [1, 1]} : vector<16x32xf32> to vector<16x8xf32>
      %c3_81 = arith.constant 3 : index
      %c0_82 = arith.constant 0 : index
      %c0_83 = arith.constant 0 : index
      %97 = vector.load %arg7[%c3_81, %c0_82, %c0_83] : memref<4x16x8xf32, #tpu.memory_space<vmem>>, vector<1x16x8xf32>
      %98 = vector.shape_cast %97 : vector<1x16x8xf32> to vector<16x8xf32>
      %99 = vector.shape_cast %96 : vector<16x8xf32> to vector<1x16x8xf32>
      tpu.vector_store %arg7[%c3_81, %c0_82, %c0_83], %99 {strides = array<i32>} : memref<4x16x8xf32, #tpu.memory_space<vmem>>, vector<1x16x8xf32>,
    } else {
    }
    return
  }
  func.func @transform_0(%arg0: i32, %arg1: i32) -> (i32, i32) {
    %c0_i32 = arith.constant 0 : i32
    return %arg0, %arg1 : i32, i32
  }
  func.func @transform_1(%arg0: i32, %arg1: i32) -> (i32, i32, i32) {
    %c0_i32 = arith.constant 0 : i32
    %c0_i32_0 = arith.constant 0 : i32
    %c0_i32_1 = arith.constant 0 : i32
    return %c0_i32, %arg1, %c0_i32_0 : i32, i32, i32
  }
  func.func @transform_2(%arg0: i32, %arg1: i32) -> (i32, i32, i32) {
    %c0_i32 = arith.constant 0 : i32
    %c0_i32_0 = arith.constant 0 : i32
    %c0_i32_1 = arith.constant 0 : i32
    %c0_i32_2 = arith.constant 0 : i32
    return %c0_i32, %c0_i32_0, %c0_i32_1 : i32, i32, i32
  }
  func.func @transform_3(%arg0: i32, %arg1: i32) -> (i32, i32, i32) {
    %c0_i32 = arith.constant 0 : i32
    %c0_i32_0 = arith.constant 0 : i32
    %c0_i32_1 = arith.constant 0 : i32
    return %c0_i32, %arg0, %c0_i32_0 : i32, i32, i32
  }
  func.func @transform_4(%arg0: i32, %arg1: i32) -> (i32, i32, i32) {
    %c0_i32 = arith.constant 0 : i32
    %c0_i32_0 = arith.constant 0 : i32
    %c0_i32_1 = arith.constant 0 : i32
    return %c0_i32, %arg0, %c0_i32_0 : i32, i32, i32
  }
  func.func @transform_5(%arg0: i32, %arg1: i32) -> (i32, i32, i32) {
    %c0_i32 = arith.constant 0 : i32
    %c0_i32_0 = arith.constant 0 : i32
    %c0_i32_1 = arith.constant 0 : i32
    return %c0_i32, %arg0, %c0_i32_0 : i32, i32, i32
  }
}

</mosaic_0001>

<llo_original>
// kernel: tpu_custom_call.1
$region0: #{tpu_custom_call.1}
  #allocation0 [shape = 'u32[]', space=smem, size = 0x4, offset = 0x4, fixed_abs, tag = 'smem constant byte address 0x4 - core index']
  #allocation1 [shape = 'u32[144,128]{1,0:T(1,128)}', space=vmem, size = 0x12000, scoped, tag = 'internal scratch']
  #allocation2 [shape = 'f32[3,16,32]{2,1,0:T(8,128)}', space=vmem, size = 0x6000, scoped, tag = 'scratch operand']
  %s0 = inlined_call_operand.hbm [shape: f32[16,32], index: 0, kind: input, shape index: {}]
  %s1 = inlined_call_operand.hbm [shape: f32[3,32,32], index: 1, kind: input, shape index: {}]
  %s2 = inlined_call_operand.vmem [shape: f32[3,1,32], index: 2, kind: input, shape index: {}]
  %s3 = inlined_call_operand.vmem [shape: f32[4,16,8], index: 3, kind: output, shape index: {0}]
  %s4 = inlined_call_operand.vmem [shape: f32[4,16,8], index: 4, kind: output, shape index: {1}]
  %s5 = inlined_call_operand.vmem [shape: f32[4,16,8], index: 5, kind: output, shape index: {2}]
  %6 = xla_tuple %s3, %s4, %s5
  %s7 = sld [smem:[#allocation0]]
  $region54: #{tpu_custom_call.1} parent=0
    _
  %s9 = ssub.s32 1, %s7
  %s10 = scalar_select 0, %s9, %s7
  $region1: #{tpu_custom_call.1} parent=0
    #allocation3 [shape = 'u8[8192]{0}', space=vmem, size = 0x2000, scoped, tag = 'input window, operand 0, single buffered']
    #allocation4 [shape = 's32[1]{0}', space=sflag, size = 0x4, scoped, tag = 'scoped memory for tpu_custom_call.1']
    #allocation5 [shape = 'u8[49152]{0}', space=vmem, size = 0xc000, scoped, tag = 'input window, operand 1, single buffered']
    #allocation6 [shape = 's32[1]{0}', space=sflag, size = 0x4, scoped, tag = 'scoped memory for tpu_custom_call.1']
    %11 = vsyncpa [#allocation4], 0
    %12 = vsyncpa [#allocation6], 0
    // Predicated region
    $region2: #{tpu_custom_call.1} parent=1 // pred_check
      _
    $region3: #{tpu_custom_call.1} parent=1 // pred_check_branch
      %14 = sbr.rel (0) target = $region5
    $region4: #{tpu_custom_call.1} parent=1 // pred_region
      %s16 = ssub.s32 256, 256
      %17 = vsyncadd [#allocation4], %s16
      %s18 = sshll.u32 [#allocation3], 4
      %s19 = int_to_ptr.vmem [resolvable:$true] %s18
      %24 = dma.hbm_to_vmem [thread:$0]  %s0, 256, %s19, [#allocation4], 128, 128, 8
    $region5: #{tpu_custom_call.1} parent=1 // pred_fallthru
      _
    // Predicated region
    $region6: #{tpu_custom_call.1} parent=1 // pred_check
      _
    $region7: #{tpu_custom_call.1} parent=1 // pred_check_branch
      %26 = sbr.rel (0) target = $region9
    $region8: #{tpu_custom_call.1} parent=1 // pred_region
      %s28 = ssub.s32 1536, 1536
      %29 = vsyncadd [#allocation6], %s28
      %s30 = sshll.u32 [#allocation5], 4
      %s31 = int_to_ptr.vmem [resolvable:$true] %s30
      %36 = dma.hbm_to_vmem [thread:$0]  %s1, 1536, %s31, [#allocation6], 128, 128, 8
    $region9: #{tpu_custom_call.1} parent=1 // pred_fallthru
      _
    // Predicated region
    $region10: #{tpu_custom_call.1} parent=1 // pred_check
      _
    $region11: #{tpu_custom_call.1} parent=1 // pred_check_branch
      %38 = sbr.rel (0) target = $region13
    $region12: #{tpu_custom_call.1} parent=1 // pred_region
      _
    $region13: #{tpu_custom_call.1} parent=1 // pred_fallthru
      _
    // Predicated region
    $region14: #{tpu_custom_call.1} parent=1 // pred_check
      _
    $region15: #{tpu_custom_call.1} parent=1 // pred_check_branch
      %40 = sbr.rel (0) target = $region17
    $region16: #{tpu_custom_call.1} parent=1 // pred_region
      %41 = dma.done [#allocation4], 256
    $region17: #{tpu_custom_call.1} parent=1 // pred_fallthru
      _
    // Predicated region
    $region18: #{tpu_custom_call.1} parent=1 // pred_check
      _
    $region19: #{tpu_custom_call.1} parent=1 // pred_check_branch
      %43 = sbr.rel (0) target = $region21
    $region20: #{tpu_custom_call.1} parent=1 // pred_region
      %44 = dma.done [#allocation6], 1536
    $region21: #{tpu_custom_call.1} parent=1 // pred_fallthru
      _
    %p45 = scmp.eq.s32.totalorder 0, 0
    // Predicated region
    $region22: #{tpu_custom_call.1} parent=1 // pred_check
      %p46 = pneg %p45
    $region23: #{tpu_custom_call.1} parent=1 // pred_check_branch
      %48 = sbr.rel (%p46) target = $region25
    $region24: #{tpu_custom_call.1} parent=1 // pred_region
      %vm49 = vcmask 261120
      %50 = vst.msk [vmem:[#allocation2] sm:$0xff] %vm49, 0.0
      %51 = vst.msk [vmem:[#allocation2 + $0x8] sm:$0xff] %vm49, 0.0
      %52 = vst.msk [vmem:[#allocation2 + $0x10] sm:$0xff] %vm49, 0.0
      %53 = vst.msk [vmem:[#allocation2 + $0x18] sm:$0xff] %vm49, 0.0
      %54 = vst.msk [vmem:[#allocation2 + $0x20] sm:$0xff] %vm49, 0.0
      %55 = vst.msk [vmem:[#allocation2 + $0x28] sm:$0xff] %vm49, 0.0
    $region25: #{tpu_custom_call.1} parent=1 // pred_fallthru
      _
    %v56 = vld [vmem:[#allocation3] sm:$0xff]
    %v57 = vld [vmem:[#allocation3 + $0x8] sm:$0xff]
    %v58 = vld [vmem:[#allocation2] sm:$0xff]
    %v59 = vld [vmem:[#allocation2 + $0x8] sm:$0xff]
    %v60 = vld [vmem:[#allocation5] sm:$0xff]
    %v61 = vld [vmem:[#allocation5 + $0x8] sm:$0xff]
    %v62 = vld [vmem:[#allocation5 + $0x10] sm:$0xff]
    %v63 = vld [vmem:[#allocation5 + $0x18] sm:$0xff]
    %vm64 = vcmask 261120
    %v66 = vsel %vm64, %v56, 0
    %v69 = vsel %vm64, %v57, 0
    %71 = vmatprep.subr.mxu0 0.0
    %72 = vmatpush1.msra.mxu0 0.0
    %73 = vmatprep.subr.mxu0 0.0
    %74 = vmatpush1.msra.mxu0 0.0
    %75 = vmatprep.subr.mxu0 0.0
    %76 = vmatpush1.msra.mxu0 0.0
    %77 = vmatprep.subr.mxu0 0.0
    %78 = vmatpush1.msra.mxu0 0.0
    %79 = vmatprep.subr.mxu0 0.0
    %80 = vmatpush1.msra.mxu0 0.0
    %81 = vmatprep.subr.mxu0 0.0
    %82 = vmatpush1.msra.mxu0 0.0
    %83 = vmatprep.subr.mxu0 0.0
    %84 = vmatpush1.msra.mxu0 0.0
    %85 = vmatprep.subr.mxu0 0.0
    %86 = vmatpush1.msra.mxu0 0.0
    %87 = vmatprep.subr.mxu0 0.0
    %88 = vmatpush1.msra.mxu0 0.0
    %89 = vmatprep.subr.mxu0 0.0
    %90 = vmatpush1.msra.mxu0 0.0
    %91 = vmatprep.subr.mxu0 0.0
    %92 = vmatpush1.msra.mxu0 0.0
    %93 = vmatprep.subr.mxu0 0.0
    %94 = vmatpush1.msra.mxu0 0.0
    %95 = vmatprep.subr.mxu0 0.0
    %96 = vmatpush1.msra.mxu0 %v63
    %97 = vmatprep.subr.mxu0 0.0
    %98 = vmatpush1.msra.mxu0 %v62
    %99 = vmatprep.subr.mxu0 0.0
    %100 = vmatpush1.msra.mxu0 %v61
    %101 = vmatprep.subr.mxu0 0.0
    %102 = vmatpush1.msra.mxu0 %v60
    %103 = vmatprep.subr.mxu0 0.0
    %104 = vmatpush2.msra.mxu0 0.0
    %105 = vmatprep.subr.mxu0 0.0
    %106 = vmatpush2.msra.mxu0 0.0
    %107 = vmatprep.subr.mxu0 0.0
    %108 = vmatpush2.msra.mxu0 0.0
    %109 = vmatprep.subr.mxu0 0.0
    %110 = vmatpush2.msra.mxu0 0.0
    %111 = vmatprep.subr.mxu0 0.0
    %112 = vmatpush2.msra.mxu0 0.0
    %113 = vmatprep.subr.mxu0 0.0
    %114 = vmatpush2.msra.mxu0 0.0
    %115 = vmatprep.subr.mxu0 0.0
    %116 = vmatpush2.msra.mxu0 0.0
    %117 = vmatprep.subr.mxu0 0.0
    %118 = vmatpush2.msra.mxu0 0.0
    %119 = vmatprep.subr.mxu0 0.0
    %120 = vmatpush2.msra.mxu0 0.0
    %121 = vmatprep.subr.mxu0 0.0
    %122 = vmatpush2.msra.mxu0 0.0
    %123 = vmatprep.subr.mxu0 0.0
    %124 = vmatpush2.msra.mxu0 0.0
    %125 = vmatprep.subr.mxu0 0.0
    %126 = vmatpush2.msra.mxu0 0.0
    %127 = vmatprep.subr.mxu0 0.0
    %128 = vmatpush2.msra.mxu0 0.0
    %129 = vmatprep.subr.mxu0 0.0
    %130 = vmatpush2.msra.mxu0 0.0
    %131 = vmatprep.subr.mxu0 0.0
    %132 = vmatpush2.msra.mxu0 0.0
    %133 = vmatprep.subr.mxu0 0.0
    %134 = vmatpush2.msra.mxu0 0.0
    %135 = vmatprep.mubr.f32.mxu0 0.0
    %136 = vmatmul.mubr.f32.gmra.mxu0 %v66
    %v137 = vpop.f32.mrf.mxu0
    %v138 = vadd.f32 0.0, %v137
    %v139 = vpop.f32.mrf.mxu0
    %140 = vmatprep.mubr.f32.mxu0 0.0
    %141 = vmatmul.mubr.f32.gmra.mxu0 %v69
    %v142 = vpop.f32.mrf.mxu0
    %v143 = vadd.f32 0.0, %v142
    %v144 = vpop.f32.mrf.mxu0
    %145 = vdwg.mxu0
    %v146 = vadd.f32 %v58, %v138
    %v147 = vadd.f32 %v59, %v143
    %148 = vst.msk [vmem:[#allocation2] sm:$0xff] %vm64, %v146
    %149 = vst.msk [vmem:[#allocation2 + $0x8] sm:$0xff] %vm64, %v147
    %s150 = scalar_lea.vmem [#allocation2], 16
    %v151 = vld [vmem:[%s150] sm:$0xff]
    %v152 = vld [vmem:[%s150 + $0x8] sm:$0xff]
    %s153 = scalar_lea.vmem [#allocation5], 32
    %v154 = vld [vmem:[%s153] sm:$0xff]
    %v155 = vld [vmem:[%s153 + $0x8] sm:$0xff]
    %v156 = vld [vmem:[%s153 + $0x10] sm:$0xff]
    %v157 = vld [vmem:[%s153 + $0x18] sm:$0xff]
    %158 = vmatprep.subr.mxu0 0.0
    %159 = vmatpush1.msra.mxu0 0.0
    %160 = vmatprep.subr.mxu0 0.0
    %161 = vmatpush1.msra.mxu0 0.0
    %162 = vmatprep.subr.mxu0 0.0
    %163 = vmatpush1.msra.mxu0 0.0
    %164 = vmatprep.subr.mxu0 0.0
    %165 = vmatpush1.msra.mxu0 0.0
    %166 = vmatprep.subr.mxu0 0.0
    %167 = vmatpush1.msra.mxu0 0.0
    %168 = vmatprep.subr.mxu0 0.0
    %169 = vmatpush1.msra.mxu0 0.0
    %170 = vmatprep.subr.mxu0 0.0
    %171 = vmatpush1.msra.mxu0 0.0
    %172 = vmatprep.subr.mxu0 0.0
    %173 = vmatpush1.msra.mxu0 0.0
    %174 = vmatprep.subr.mxu0 0.0
    %175 = vmatpush1.msra.mxu0 0.0
    %176 = vmatprep.subr.mxu0 0.0
    %177 = vmatpush1.msra.mxu0 0.0
    %178 = vmatprep.subr.mxu0 0.0
    %179 = vmatpush1.msra.mxu0 0.0
    %180 = vmatprep.subr.mxu0 0.0
    %181 = vmatpush1.msra.mxu0 0.0
    %182 = vmatprep.subr.mxu0 0.0
    %183 = vmatpush1.msra.mxu0 %v157
    %184 = vmatprep.subr.mxu0 0.0
    %185 = vmatpush1.msra.mxu0 %v156
    %186 = vmatprep.subr.mxu0 0.0
    %187 = vmatpush1.msra.mxu0 %v155
    %188 = vmatprep.subr.mxu0 0.0
    %189 = vmatpush1.msra.mxu0 %v154
    %190 = vmatprep.subr.mxu0 0.0
    %191 = vmatpush2.msra.mxu0 0.0
    %192 = vmatprep.subr.mxu0 0.0
    %193 = vmatpush2.msra.mxu0 0.0
    %194 = vmatprep.subr.mxu0 0.0
    %195 = vmatpush2.msra.mxu0 0.0
    %196 = vmatprep.subr.mxu0 0.0
    %197 = vmatpush2.msra.mxu0 0.0
    %198 = vmatprep.subr.mxu0 0.0
    %199 = vmatpush2.msra.mxu0 0.0
    %200 = vmatprep.subr.mxu0 0.0
    %201 = vmatpush2.msra.mxu0 0.0
    %202 = vmatprep.subr.mxu0 0.0
    %203 = vmatpush2.msra.mxu0 0.0
    %204 = vmatprep.subr.mxu0 0.0
    %205 = vmatpush2.msra.mxu0 0.0
    %206 = vmatprep.subr.mxu0 0.0
    %207 = vmatpush2.msra.mxu0 0.0
    %208 = vmatprep.subr.mxu0 0.0
    %209 = vmatpush2.msra.mxu0 0.0
    %210 = vmatprep.subr.mxu0 0.0
    %211 = vmatpush2.msra.mxu0 0.0
    %212 = vmatprep.subr.mxu0 0.0
    %213 = vmatpush2.msra.mxu0 0.0
    %214 = vmatprep.subr.mxu0 0.0
    %215 = vmatpush2.msra.mxu0 0.0
    %216 = vmatprep.subr.mxu0 0.0
    %217 = vmatpush2.msra.mxu0 0.0
    %218 = vmatprep.subr.mxu0 0.0
    %219 = vmatpush2.msra.mxu0 0.0
    %220 = vmatprep.subr.mxu0 0.0
    %221 = vmatpush2.msra.mxu0 0.0
    %222 = vmatprep.mubr.f32.mxu0 0.0
    %223 = vmatmul.mubr.f32.gmra.mxu0 %v66
    %v224 = vpop.f32.mrf.mxu0
    %v225 = vadd.f32 0.0, %v224
    %v226 = vpop.f32.mrf.mxu0
    %227 = vmatprep.mubr.f32.mxu0 0.0
    %228 = vmatmul.mubr.f32.gmra.mxu0 %v69
    %v229 = vpop.f32.mrf.mxu0
    %v230 = vadd.f32 0.0, %v229
    %v231 = vpop.f32.mrf.mxu0
    %232 = vdwg.mxu0
    %v233 = vadd.f32 %v151, %v225
    %v234 = vadd.f32 %v152, %v230
    %235 = vst.msk [vmem:[%s150] sm:$0xff] %vm64, %v233
    %236 = vst.msk [vmem:[%s150 + $0x8] sm:$0xff] %vm64, %v234
    %s237 = scalar_lea.vmem [#allocation2], 32
    %v238 = vld [vmem:[%s237] sm:$0xff]
    %v239 = vld [vmem:[%s237 + $0x8] sm:$0xff]
    %s240 = scalar_lea.vmem [#allocation5], 64
    %v241 = vld [vmem:[%s240] sm:$0xff]
    %v242 = vld [vmem:[%s240 + $0x8] sm:$0xff]
    %v243 = vld [vmem:[%s240 + $0x10] sm:$0xff]
    %v244 = vld [vmem:[%s240 + $0x18] sm:$0xff]
    %245 = vmatprep.subr.mxu0 0.0
    %246 = vmatpush1.msra.mxu0 0.0
    %247 = vmatprep.subr.mxu0 0.0
    %248 = vmatpush1.msra.mxu0 0.0
    %249 = vmatprep.subr.mxu0 0.0
    %250 = vmatpush1.msra.mxu0 0.0
    %251 = vmatprep.subr.mxu0 0.0
    %252 = vmatpush1.msra.mxu0 0.0
    %253 = vmatprep.subr.mxu0 0.0
    %254 = vmatpush1.msra.mxu0 0.0
    %255 = vmatprep.subr.mxu0 0.0
    %256 = vmatpush1.msra.mxu0 0.0
    %257 = vmatprep.subr.mxu0 0.0
    %258 = vmatpush1.msra.mxu0 0.0
    %259 = vmatprep.subr.mxu0 0.0
    %260 = vmatpush1.msra.mxu0 0.0
    %261 = vmatprep.subr.mxu0 0.0
    %262 = vmatpush1.msra.mxu0 0.0
    %263 = vmatprep.subr.mxu0 0.0
    %264 = vmatpush1.msra.mxu0 0.0
    %265 = vmatprep.subr.mxu0 0.0
    %266 = vmatpush1.msra.mxu0 0.0
    %267 = vmatprep.subr.mxu0 0.0
    %268 = vmatpush1.msra.mxu0 0.0
    %269 = vmatprep.subr.mxu0 0.0
    %270 = vmatpush1.msra.mxu0 %v244
    %271 = vmatprep.subr.mxu0 0.0
    %272 = vmatpush1.msra.mxu0 %v243
    %273 = vmatprep.subr.mxu0 0.0
    %274 = vmatpush1.msra.mxu0 %v242
    %275 = vmatprep.subr.mxu0 0.0
    %276 = vmatpush1.msra.mxu0 %v241
    %277 = vmatprep.subr.mxu0 0.0
    %278 = vmatpush2.msra.mxu0 0.0
    %279 = vmatprep.subr.mxu0 0.0
    %280 = vmatpush2.msra.mxu0 0.0
    %281 = vmatprep.subr.mxu0 0.0
    %282 = vmatpush2.msra.mxu0 0.0
    %283 = vmatprep.subr.mxu0 0.0
    %284 = vmatpush2.msra.mxu0 0.0
    %285 = vmatprep.subr.mxu0 0.0
    %286 = vmatpush2.msra.mxu0 0.0
    %287 = vmatprep.subr.mxu0 0.0
    %288 = vmatpush2.msra.mxu0 0.0
    %289 = vmatprep.subr.mxu0 0.0
    %290 = vmatpush2.msra.mxu0 0.0
    %291 = vmatprep.subr.mxu0 0.0
    %292 = vmatpush2.msra.mxu0 0.0
    %293 = vmatprep.subr.mxu0 0.0
    %294 = vmatpush2.msra.mxu0 0.0
    %295 = vmatprep.subr.mxu0 0.0
    %296 = vmatpush2.msra.mxu0 0.0
    %297 = vmatprep.subr.mxu0 0.0
    %298 = vmatpush2.msra.mxu0 0.0
    %299 = vmatprep.subr.mxu0 0.0
    %300 = vmatpush2.msra.mxu0 0.0
    %301 = vmatprep.subr.mxu0 0.0
    %302 = vmatpush2.msra.mxu0 0.0
    %303 = vmatprep.subr.mxu0 0.0
    %304 = vmatpush2.msra.mxu0 0.0
    %305 = vmatprep.subr.mxu0 0.0
    %306 = vmatpush2.msra.mxu0 0.0
    %307 = vmatprep.subr.mxu0 0.0
    %308 = vmatpush2.msra.mxu0 0.0
    %309 = vmatprep.mubr.f32.mxu0 0.0
    %310 = vmatmul.mubr.f32.gmra.mxu0 %v66
    %v311 = vpop.f32.mrf.mxu0
    %v312 = vadd.f32 0.0, %v311
    %v313 = vpop.f32.mrf.mxu0
    %314 = vmatprep.mubr.f32.mxu0 0.0
    %315 = vmatmul.mubr.f32.gmra.mxu0 %v69
    %v316 = vpop.f32.mrf.mxu0
    %v317 = vadd.f32 0.0, %v316
    %v318 = vpop.f32.mrf.mxu0
    %319 = vdwg.mxu0
    %v320 = vadd.f32 %v238, %v312
    %v321 = vadd.f32 %v239, %v317
    %322 = vst.msk [vmem:[%s237] sm:$0xff] %vm64, %v320
    %323 = vst.msk [vmem:[%s237 + $0x8] sm:$0xff] %vm64, %v321
    // Predicated region
    $region26: #{tpu_custom_call.1} parent=1 // pred_check
      %p324 = pneg %p45
    $region27: #{tpu_custom_call.1} parent=1 // pred_check_branch
      %326 = sbr.rel (%p324) target = $region29
    $region28: #{tpu_custom_call.1} parent=1 // pred_region
      %v327 = vld [vmem:[#allocation2] sm:$0xff]
      %v328 = vld [vmem:[#allocation2 + $0x8] sm:$0xff]
      %v329 = vld [vmem:[%s2] sm:$0x1]
      %v331 = vlaneseq
      %v332 = vshrl.u32 %v331, 7
      %v333 = vsub.s32 0, %v332
      %v334 = vrot.slane %v329, %v333
      %v336 = vadd.f32 %v327, %v334
      %v337 = vadd.f32 %v328, %v334
      %vm338 = vcmask 64512
      %339 = vst.msk [vmem:[%s3] sm:$0xff] %vm338, %v336
      %340 = vst.msk [vmem:[%s3 + $0x8] sm:$0xff] %vm338, %v337
      %343 = vrot.lane.b32.xlu0 %v336, 120
      %v344 = vpop.permute.xlu0 %343
      %345 = vrot.lane.b32.xlu0 %v337, 120
      %v346 = vpop.permute.xlu0 %345
      %s349 = scalar_lea.vmem %s3, 16
      %350 = vst.msk [vmem:[%s349] sm:$0xff] %vm338, %v344
      %351 = vst.msk [vmem:[%s349 + $0x8] sm:$0xff] %vm338, %v346
      %352 = vrot.lane.b32.xlu0 %v336, 112
      %v353 = vpop.permute.xlu0 %352
      %354 = vrot.lane.b32.xlu0 %v337, 112
      %v355 = vpop.permute.xlu0 %354
      %s358 = scalar_lea.vmem %s3, 32
      %359 = vst.msk [vmem:[%s358] sm:$0xff] %vm338, %v353
      %360 = vst.msk [vmem:[%s358 + $0x8] sm:$0xff] %vm338, %v355
      %361 = vrot.lane.b32.xlu0 %v336, 104
      %v362 = vpop.permute.xlu0 %361
      %363 = vrot.lane.b32.xlu0 %v337, 104
      %v364 = vpop.permute.xlu0 %363
      %s367 = scalar_lea.vmem %s3, 48
      %368 = vst.msk [vmem:[%s367] sm:$0xff] %vm338, %v362
      %369 = vst.msk [vmem:[%s367 + $0x8] sm:$0xff] %vm338, %v364
      %v370 = vld [vmem:[%s150] sm:$0xff]
      %v371 = vld [vmem:[%s150 + $0x8] sm:$0xff]
      %s372 = scalar_lea.vmem %s2, 1
      %v373 = vld [vmem:[%s372] sm:$0x1]
      %v375 = vlaneseq
      %v376 = vshrl.u32 %v375, 7
      %v377 = vsub.s32 0, %v376
      %v378 = vrot.slane %v373, %v377
      %v380 = vadd.f32 %v370, %v378
      %v381 = vadd.f32 %v371, %v378
      %382 = vst.msk [vmem:[%s4] sm:$0xff] %vm338, %v380
      %383 = vst.msk [vmem:[%s4 + $0x8] sm:$0xff] %vm338, %v381
      %386 = vrot.lane.b32.xlu0 %v380, 120
      %v387 = vpop.permute.xlu0 %386
      %388 = vrot.lane.b32.xlu0 %v381, 120
      %v389 = vpop.permute.xlu0 %388
      %s392 = scalar_lea.vmem %s4, 16
      %393 = vst.msk [vmem:[%s392] sm:$0xff] %vm338, %v387
      %394 = vst.msk [vmem:[%s392 + $0x8] sm:$0xff] %vm338, %v389
      %395 = vrot.lane.b32.xlu0 %v380, 112
      %v396 = vpop.permute.xlu0 %395
      %397 = vrot.lane.b32.xlu0 %v381, 112
      %v398 = vpop.permute.xlu0 %397
      %s401 = scalar_lea.vmem %s4, 32
      %402 = vst.msk [vmem:[%s401] sm:$0xff] %vm338, %v396
      %403 = vst.msk [vmem:[%s401 + $0x8] sm:$0xff] %vm338, %v398
      %404 = vrot.lane.b32.xlu0 %v380, 104
      %v405 = vpop.permute.xlu0 %404
      %406 = vrot.lane.b32.xlu0 %v381, 104
      %v407 = vpop.permute.xlu0 %406
      %s410 = scalar_lea.vmem %s4, 48
      %411 = vst.msk [vmem:[%s410] sm:$0xff] %vm338, %v405
      %412 = vst.msk [vmem:[%s410 + $0x8] sm:$0xff] %vm338, %v407
      %v413 = vld [vmem:[%s237] sm:$0xff]
      %v414 = vld [vmem:[%s237 + $0x8] sm:$0xff]
      %s415 = scalar_lea.vmem %s2, 2
      %v416 = vld [vmem:[%s415] sm:$0x1]
      %v418 = vlaneseq
      %v419 = vshrl.u32 %v418, 7
      %v420 = vsub.s32 0, %v419
      %v421 = vrot.slane %v416, %v420
      %v423 = vadd.f32 %v413, %v421
      %v424 = vadd.f32 %v414, %v421
      %425 = vst.msk [vmem:[%s5] sm:$0xff] %vm338, %v423
      %426 = vst.msk [vmem:[%s5 + $0x8] sm:$0xff] %vm338, %v424
      %429 = vrot.lane.b32.xlu0 %v423, 120
      %v430 = vpop.permute.xlu0 %429
      %431 = vrot.lane.b32.xlu0 %v424, 120
      %v432 = vpop.permute.xlu0 %431
      %s435 = scalar_lea.vmem %s5, 16
      %436 = vst.msk [vmem:[%s435] sm:$0xff] %vm338, %v430
      %437 = vst.msk [vmem:[%s435 + $0x8] sm:$0xff] %vm338, %v432
      %438 = vrot.lane.b32.xlu0 %v423, 112
      %v439 = vpop.permute.xlu0 %438
      %440 = vrot.lane.b32.xlu0 %v424, 112
      %v441 = vpop.permute.xlu0 %440
      %s444 = scalar_lea.vmem %s5, 32
      %445 = vst.msk [vmem:[%s444] sm:$0xff] %vm338, %v439
      %446 = vst.msk [vmem:[%s444 + $0x8] sm:$0xff] %vm338, %v441
      %447 = vrot.lane.b32.xlu0 %v423, 104
      %v448 = vpop.permute.xlu0 %447
      %449 = vrot.lane.b32.xlu0 %v424, 104
      %v450 = vpop.permute.xlu0 %449
      %s453 = scalar_lea.vmem %s5, 48
      %454 = vst.msk [vmem:[%s453] sm:$0xff] %vm338, %v448
      %455 = vst.msk [vmem:[%s453 + $0x8] sm:$0xff] %vm338, %v450
    $region29: #{tpu_custom_call.1} parent=1 // pred_fallthru
      _
    // Predicated region
    $region30: #{tpu_custom_call.1} parent=1 // pred_check
      _
    $region31: #{tpu_custom_call.1} parent=1 // pred_check_branch
      %457 = sbr.rel (0) target = $region33
    $region32: #{tpu_custom_call.1} parent=1 // pred_region
      _
    $region33: #{tpu_custom_call.1} parent=1 // pred_fallthru
      _
    // Predicated region
    $region34: #{tpu_custom_call.1} parent=1 // pred_check
      _
    $region35: #{tpu_custom_call.1} parent=1 // pred_check_branch
      %459 = sbr.rel (0) target = $region37
    $region36: #{tpu_custom_call.1} parent=1 // pred_region
      _
    $region37: #{tpu_custom_call.1} parent=1 // pred_fallthru
      _
    // Predicated region
    $region38: #{tpu_custom_call.1} parent=1 // pred_check
      _
    $region39: #{tpu_custom_call.1} parent=1 // pred_check_branch
      %461 = sbr.rel (0) target = $region41
    $region40: #{tpu_custom_call.1} parent=1 // pred_region
      _
    $region41: #{tpu_custom_call.1} parent=1 // pred_fallthru
      _
    // Predicated region
    $region42: #{tpu_custom_call.1} parent=1 // pred_check
      _
    $region43: #{tpu_custom_call.1} parent=1 // pred_check_branch
      %463 = sbr.rel (0) target = $region45
    $region44: #{tpu_custom_call.1} parent=1 // pred_region
      _
    $region45: #{tpu_custom_call.1} parent=1 // pred_fallthru
      _
    // Predicated region
    $region46: #{tpu_custom_call.1} parent=1 // pred_check
      _
    $region47: #{tpu_custom_call.1} parent=1 // pred_check_branch
      %465 = sbr.rel (0) target = $region49
    $region48: #{tpu_custom_call.1} parent=1 // pred_region
      _
    $region49: #{tpu_custom_call.1} parent=1 // pred_fallthru
      _
    // Predicated region
    $region50: #{tpu_custom_call.1} parent=1 // pred_check
      _
    $region51: #{tpu_custom_call.1} parent=1 // pred_check_branch
      %467 = sbr.rel (0) target = $region53
    $region52: #{tpu_custom_call.1} parent=1 // pred_region
      _
    $region53: #{tpu_custom_call.1} parent=1 // pred_fallthru
      _
    %468 = vsyncpa [#allocation4], 1
    %469 = vsyncpa [#allocation6], 1

</llo_original>
